<compile_context>
chip_gen: v6e
topology: v6e:2x2x1
jax: 0.10.0
libtpu: 0.0.40
codegen_flags: <defaults>
</compile_context>

<pallas_src>
import math
import functools

import jax
import jax.numpy as jnp
from jax.experimental import pallas as pl
from jax.experimental.pallas import tpu as pltpu


def _attn_kernel(q_ref, k_ref, v_ref, o_ref, qs_sc, m_sc, l_sc, acc_sc, *,
                 scale2, kv_len, tk_block, mask_keys):
    # q_ref: (Hb, C, tq)   k_ref/v_ref: (Hb, C, tk)   o_ref: (Hb, C, tq)
    ki = pl.program_id(2)

    @pl.when(ki == 0)
    def _init():
        m_sc[...] = jnp.full_like(m_sc, -jnp.inf)
        # The q block is resident across all kv steps (its index_map ignores
        # ki): apply the softmax scale once and keep the scaled q in scratch.
        qs_sc[...] = (q_ref[...] * scale2).astype(qs_sc.dtype)

    q = qs_sc[...]                               # (Hb, C, tq), input dtype
    k = k_ref[...]                               # (Hb, C, tk)
    v = v_ref[...]                               # (Hb, C, tk)

    # scores[b, s, t] = sum_c k[b,c,s] * q[b,c,t]: contraction over the sublane
    # dim of both operands (transposed-lhs MXU form), f32 accumulation.
    s = jnp.einsum('bcs,bct->bst', k, q,
                   preferred_element_type=jnp.float32)   # (Hb, tk, tq) f32

    if mask_keys:
        # Padded key positions (>= kv_len) get -inf -> exp == 0.  Every kv tile
        # contains at least one real key (padding < 128 <= tk), so m_new stays
        # finite and no NaNs can appear.
        kv_idx = ki * tk_block + jax.lax.broadcasted_iota(jnp.int32, s.shape, 1)
        s = jnp.where(kv_idx < kv_len, s, -jnp.inf)

    # Online softmax over the kv axis (axis=1), all statistics in f32.
    m_prev = m_sc[...]                                           # (Hb, 1, tq)
    m_new = jnp.maximum(m_prev, jnp.max(s, axis=1, keepdims=True))
    p = jnp.exp(s - m_new)                                       # (Hb, tk, tq)
    p_sum = jnp.sum(p, axis=1, keepdims=True)                    # (Hb, 1, tq)

    # pv[b,c,t] = sum_s v[b,c,s] * p[b,s,t]  (canonical MXU form).
    pv = jnp.einsum('bcs,bst->bct', v, p.astype(v.dtype),
                    preferred_element_type=jnp.float32)          # (Hb, C, tq)

    @pl.when(ki == 0)
    def _first():
        # Overwrite: skips the alpha-rescale VPU pass on the first kv step.
        l_sc[...] = p_sum
        acc_sc[...] = pv

    @pl.when(ki > 0)
    def _rest():
        alpha = jnp.exp(m_prev - m_new)                          # (Hb, 1, tq)
        l_sc[...] = alpha * l_sc[...] + p_sum
        acc_sc[...] = alpha * acc_sc[...] + pv

    m_sc[...] = m_new

    @pl.when(ki == pl.num_programs(2) - 1)
    def _finalize():
        # Deferred normalization: one reciprocal + (C, tq) multiply per q tile
        # instead of T x T divides.  Exact reciprocal to match f32 reference.
        inv_l = pl.reciprocal(l_sc[...], approx=False)           # (Hb, 1, tq)
        o_ref[...] = (acc_sc[...] * inv_l).astype(o_ref.dtype)


def _vmem_bytes(hb, ch, tq, tk, itemsize):
    in_bufs = 2 * hb * ch * (tq + 2 * tk) * itemsize        # double-buffered q/k/v
    out_bufs = 2 * hb * ch * tq * itemsize                   # double-buffered output
    scratch = hb * (2 * tq + ch * tq) * 4                    # m, l, acc (f32)
    scratch += hb * ch * tq * itemsize                       # scaled-q stash
    temps = hb * (2 * tk * tq + 2 * ch * tq + ch * tk) * 4   # scores/exp/pv/casts
    return in_bufs + out_bufs + scratch + temps


def _vmem_policy():
    """Return (tile-selection budget, scoped-vmem-limit cap) in bytes per TPU gen."""
    mib = 1024 * 1024
    phys = None
    try:
        phys = int(pltpu.get_tpu_info().vmem_capacity_bytes)
    except Exception:
        phys = None
    kind = ""
    try:
        kind = jax.devices()[0].device_kind.lower()
    except Exception:
        pass
    # v7x: 64 MiB physical VMEM per TensorCore -> leave headroom for compiler
    # scratch and the auto-pipeline's double buffers.
    if (phys is not None and phys <= 80 * mib) or "7" in kind:
        return 28 * mib, 48 * mib
    # v5e: HBM-bound; modest working set, but raise the 16 MiB scoped default.
    if ("v5e" in kind) or ("v5 lite" in kind) or ("v5litepod" in kind):
        return 12 * mib, 24 * mib
    # v6e (and unknown): 128 MiB physical, 32 MiB scoped default.
    return 24 * mib, 48 * mib


def _pick_seq_tile(T, cap):
    """Largest multiple of 128 that divides T and is <= cap; else full T."""
    if T <= cap or T % 128 != 0:
        return T
    best = 128
    t = 256
    while t <= cap:
        if T % t == 0:
            best = t
        t += 128
    return best


def _pick_tiles(ch, T, itemsize, budget):
    # Prefer large tq first (K/V are re-streamed from HBM once per q tile, so
    # HBM traffic ~ T/tq); shrink tk before tq to bound the f32 score temps.
    for tq_cap, tk_cap in ((512, 512), (512, 384), (512, 256),
                           (384, 256), (256, 256), (256, 128), (128, 128)):
        tq = _pick_seq_tile(T, tq_cap)
        tk = _pick_seq_tile(T, tk_cap)
        if _vmem_bytes(1, ch, tq, tk, itemsize) <= budget:
            return tq, tk
    return _pick_seq_tile(T, 128), _pick_seq_tile(T, 128)


def _pick_head_block(B, ch, tq, tk, n_q_tiles, itemsize, budget):
    for hb in (16, 8, 4, 2, 1):
        if B % hb:
            continue
        if hb > 1 and (B // hb) * n_q_tiles < 2:
            continue   # keep >= 2 parallel grid items so a v7x TC isn't idle
        if _vmem_bytes(hb, ch, tq, tk, itemsize) <= budget:
            return hb
    return 1


def qkv_attention_legacy(qkv, n_heads):
    """qkv: [N, H*3*C, T] -> [N, H*C, T]   (mask=None, rel_pos=None path)."""
    # TODO(synk): optional `mask` / `rel_pos` arguments of the PyTorch module
    # are not implemented (the default forward path uses neither).
    bs, width, length = qkv.shape
    assert width % (3 * n_heads) == 0
    ch = width // (3 * n_heads)
    scale2 = 1.0 / math.sqrt(ch)          # (1 / ch**0.25) ** 2, applied once to q

    dtype = qkv.dtype
    itemsize = jnp.dtype(dtype).itemsize
    B = bs * n_heads
    T = length

    # ---- one-time layout fixups (at most one pad copy; usually free) ----
    # Channel padding keeps the single-array / three-view trick when ch is not
    # sublane-aligned; zero channels do not change q.k dots or the softmax.
    sub = 8 * max(1, 4 // itemsize)              # 8 (f32), 16 (bf16), 32 (int8)
    ch_p = ch if ch % sub == 0 else ((ch + sub - 1) // sub) * sub
    # For large irregular T, pad to a multiple of 128 and mask padded keys in
    # the kernel instead of falling back to full-T blocks.
    T_p = T
    mask_keys = False
    if T % 128 != 0 and T > 512:
        T_p = ((T + 127) // 128) * 128
        mask_keys = True

    qkv_r = qkv.reshape(B, 3, ch, T)
    if ch_p != ch or T_p != T:
        qkv_r = jnp.pad(qkv_r, ((0, 0), (0, 0), (0, ch_p - ch), (0, T_p - T)))
    qkv_r = qkv_r.reshape(B, 3 * ch_p, T_p)      # contiguous reshape

    # ---- generation-aware tiling ----
    budget, limit_cap = _vmem_policy()
    tq, tk = _pick_tiles(ch_p, T_p, itemsize, budget)
    n_q_tiles = T_p // tq
    hb = _pick_head_block(B, ch_p, tq, tk, n_q_tiles, itemsize, budget)
    grid = (B // hb, n_q_tiles, T_p // tk)

    est = _vmem_bytes(hb, ch_p, tq, tk, itemsize)
    vmem_limit = int(min(limit_cap, max(est + est // 2, 16 * 1024 * 1024)))

    kernel = functools.partial(_attn_kernel, scale2=scale2, kv_len=T,
                               tk_block=tk, mask_keys=mask_keys)

    # Three views of one array; BlockSpecs pick q/k/v by block index along the
    # (3*ch_p) channel axis -> no wrapper-side slice copies.
    q_map = lambda b, qi, ki: (b, 0, qi)
    k_map = lambda b, qi, ki: (b, 1, ki)
    v_map = lambda b, qi, ki: (b, 2, ki)

    out = pl.pallas_call(
        kernel,
        out_shape=jax.ShapeDtypeStruct((B, ch_p, T_p), dtype),
        grid_spec=pltpu.PrefetchScalarGridSpec(
            num_scalar_prefetch=0,
            grid=grid,
            in_specs=[
                pl.BlockSpec((hb, ch_p, tq), q_map),
                pl.BlockSpec((hb, ch_p, tk), k_map),
                pl.BlockSpec((hb, ch_p, tk), v_map),
            ],
            out_specs=pl.BlockSpec((hb, ch_p, tq), lambda b, qi, ki: (b, 0, qi)),
            scratch_shapes=[
                pltpu.VMEM((hb, ch_p, tq), dtype),        # scaled q (per q tile)
                pltpu.VMEM((hb, 1, tq), jnp.float32),     # running max
                pltpu.VMEM((hb, 1, tq), jnp.float32),     # running denom
                pltpu.VMEM((hb, ch_p, tq), jnp.float32),  # f32 accumulator
            ],
        ),
        compiler_params=pltpu.CompilerParams(
            dimension_semantics=("parallel", "parallel", "arbitrary"),
            vmem_limit_bytes=vmem_limit,
        ),
    )(qkv_r, qkv_r, qkv_r)

    if ch_p != ch or T_p != T:
        out = out[:, :ch, :T]
    return out.reshape(bs, n_heads * ch, T)


def _reference(qkv, n_heads):
    bs, width, length = qkv.shape
    ch = width // (3 * n_heads)
    qkv_r = qkv.reshape(bs * n_heads, 3 * ch, length)
    q, k, v = qkv_r[:, :ch], qkv_r[:, ch:2 * ch], qkv_r[:, 2 * ch:]
    scale = 1.0 / math.sqrt(math.sqrt(ch))
    w = jnp.einsum('bct,bcs->bts', q * scale, k * scale)
    w = jax.nn.softmax(w.astype(jnp.float32), axis=-1).astype(w.dtype)
    a = jnp.einsum('bts,bcs->bct', w, v)
    return a.reshape(bs, -1, length)


if __name__ == "__main__":
    # Small, module-consistent shapes: N=2, heads=2, C=8, T=16 -> width = H*3*C = 48
    N, H, C, T = 2, 2, 8, 16
    key = jax.random.PRNGKey(0)
    qkv = jax.random.normal(key, (N, H * 3 * C, T), dtype=jnp.float32)

    out = qkv_attention_legacy(qkv, n_heads=H)
    out = jax.block_until_ready(out)

    ref = _reference(qkv, n_heads=H)
    assert out.shape == (N, H * C, T), out.shape
    assert jnp.allclose(out, ref, atol=2e-5, rtol=2e-5), \
        float(jnp.max(jnp.abs(out - ref)))

    print("KERNEL_OK")
</pallas_src>

<mosaic_0001>
module attributes {stable_mosaic.version = 11 : i64} {
  func.func @_attn_kernel(%arg0: i32, %arg1: i32, %arg2: i32, %arg3: memref<2x8x16xf32, #tpu.memory_space<vmem>>, %arg4: memref<2x8x16xf32, #tpu.memory_space<vmem>>, %arg5: memref<2x8x16xf32, #tpu.memory_space<vmem>>, %arg6: memref<2x8x16xf32, #tpu.memory_space<vmem>>, %arg7: memref<2x8x16xf32, #tpu.memory_space<vmem>>, %arg8: memref<2x1x16xf32, #tpu.memory_space<vmem>>, %arg9: memref<2x1x16xf32, #tpu.memory_space<vmem>>, %arg10: memref<2x8x16xf32, #tpu.memory_space<vmem>>) attributes {dimension_semantics = [#tpu.dimension_semantics<parallel>, #tpu.dimension_semantics<parallel>, #tpu.dimension_semantics<arbitrary>], iteration_bounds = array<i64: 2, 1, 1>, scalar_prefetch = 0 : i64, scratch_operands = 4 : i64, tpu.core_type = #tpu.core_type<tc>, window_params = [{transform_indices = @transform_0, window_bounds = array<i64: 2, 8, 16>}, {transform_indices = @transform_1, window_bounds = array<i64: 2, 8, 16>}, {transform_indices = @transform_2, window_bounds = array<i64: 2, 8, 16>}, {transform_indices = @transform_3, window_bounds = array<i64: 2, 8, 16>}]} {
    %c0_i32 = arith.constant 0 : i32
    %0 = arith.cmpi eq, %arg2, %c0_i32 : i32
    %1 = arith.extui %0 : i1 to i32
    %c0_i32_0 = arith.constant 0 : i32
    %2 = arith.cmpi ne, %1, %c0_i32_0 : i32
    scf.if %2 {
      %cst_24 = arith.constant 0xFF800000 : f32
      %27 = vector.broadcast %cst_24 : f32 to vector<2x1x16xf32>
      %c0_25 = arith.constant 0 : index
      %c0_26 = arith.constant 0 : index
      %c0_27 = arith.constant 0 : index
      %28 = vector.load %arg8[%c0_25, %c0_26, %c0_27] : memref<2x1x16xf32, #tpu.memory_space<vmem>>, vector<2x1x16xf32>
      tpu.vector_store %arg8[%c0_25, %c0_26, %c0_27], %27 {strides = array<i32>} : memref<2x1x16xf32, #tpu.memory_space<vmem>>, vector<2x1x16xf32>,
      %c0_28 = arith.constant 0 : index
      %c0_29 = arith.constant 0 : index
      %c0_30 = arith.constant 0 : index
      %29 = vector.load %arg3[%c0_28, %c0_29, %c0_30] : memref<2x8x16xf32, #tpu.memory_space<vmem>>, vector<2x8x16xf32>
      %cst_31 = arith.constant 0.353553385 : f32
      %30 = vector.broadcast %cst_31 : f32 to vector<2x8x16xf32>
      %31 = arith.mulf %29, %30 : vector<2x8x16xf32>
      %c0_32 = arith.constant 0 : index
      %c0_33 = arith.constant 0 : index
      %c0_34 = arith.constant 0 : index
      %32 = vector.load %arg7[%c0_32, %c0_33, %c0_34] : memref<2x8x16xf32, #tpu.memory_space<vmem>>, vector<2x8x16xf32>
      tpu.vector_store %arg7[%c0_32, %c0_33, %c0_34], %31 {strides = array<i32>} : memref<2x8x16xf32, #tpu.memory_space<vmem>>, vector<2x8x16xf32>,
    } else {
    }
    %c0 = arith.constant 0 : index
    %c0_1 = arith.constant 0 : index
    %c0_2 = arith.constant 0 : index
    %3 = vector.load %arg7[%c0, %c0_1, %c0_2] : memref<2x8x16xf32, #tpu.memory_space<vmem>>, vector<2x8x16xf32>
    %c0_3 = arith.constant 0 : index
    %c0_4 = arith.constant 0 : index
    %c0_5 = arith.constant 0 : index
    %4 = vector.load %arg4[%c0_3, %c0_4, %c0_5] : memref<2x8x16xf32, #tpu.memory_space<vmem>>, vector<2x8x16xf32>
    %c0_6 = arith.constant 0 : index
    %c0_7 = arith.constant 0 : index
    %c0_8 = arith.constant 0 : index
    %5 = vector.load %arg5[%c0_6, %c0_7, %c0_8] : memref<2x8x16xf32, #tpu.memory_space<vmem>>, vector<2x8x16xf32>
    "tpu.trace_start"() <{level = 10 : i32, message = "bcs,bct->bst"}> : () -> ()
    %cst = arith.constant dense<0.000000e+00> : vector<2x16x16xf32>
    %6 = tpu.matmul %4, %3, %cst {dimension_numbers = #tpu.dot_dimension_numbers<[1], [1], [2], [2], [0, 0, 0, 2, 1, 2], [0], [0]>} : vector<2x8x16xf32>, vector<2x8x16xf32>, vector<2x16x16xf32> -> vector<2x16x16xf32>
    "tpu.trace_stop"() : () -> ()
    %c0_9 = arith.constant 0 : index
    %c0_10 = arith.constant 0 : index
    %c0_11 = arith.constant 0 : index
    %7 = vector.load %arg8[%c0_9, %c0_10, %c0_11] : memref<2x1x16xf32, #tpu.memory_space<vmem>>, vector<2x1x16xf32>
    %cst_12 = arith.constant dense<0xFF800000> : vector<2x16xf32>
    %8 = vector.multi_reduction <maximumf>, %6, %cst_12 [1] : vector<2x16x16xf32> to vector<2x16xf32>
    %9 = vector.shape_cast %8 : vector<2x16xf32> to vector<2x1x16xf32>
    %10 = arith.maximumf %7, %9 : vector<2x1x16xf32>
    %11 = vector.broadcast %10 : vector<2x1x16xf32> to vector<2x16x16xf32>
    %12 = arith.subf %6, %11 : vector<2x16x16xf32>
    %13 = math.exp %12 : vector<2x16x16xf32>
    %cst_13 = arith.constant dense<0.000000e+00> : vector<2x16xf32>
    %14 = vector.multi_reduction <add>, %13, %cst_13 [1] : vector<2x16x16xf32> to vector<2x16xf32>
    %15 = vector.shape_cast %14 : vector<2x16xf32> to vector<2x1x16xf32>
    "tpu.trace_start"() <{level = 10 : i32, message = "bcs,bst->bct"}> : () -> ()
    %cst_14 = arith.constant dense<0.000000e+00> : vector<2x8x16xf32>
    %16 = tpu.matmul %5, %13, %cst_14 {dimension_numbers = #tpu.dot_dimension_numbers<[2], [1], [1], [2], [0, 0, 0, 1, 1, 2], [0], [0]>} : vector<2x8x16xf32>, vector<2x16x16xf32>, vector<2x8x16xf32> -> vector<2x8x16xf32>
    %c0_i32_15 = arith.constant 0 : i32
    "tpu.trace_stop"() : () -> ()
    %17 = arith.cmpi eq, %arg2, %c0_i32_15 : i32
    %18 = arith.extui %17 : i1 to i32
    %c0_i32_16 = arith.constant 0 : i32
    %19 = arith.cmpi ne, %18, %c0_i32_16 : i32
    scf.if %19 {
      %c0_24 = arith.constant 0 : index
      %c0_25 = arith.constant 0 : index
      %c0_26 = arith.constant 0 : index
      %27 = vector.load %arg9[%c0_24, %c0_25, %c0_26] : memref<2x1x16xf32, #tpu.memory_space<vmem>>, vector<2x1x16xf32>
      tpu.vector_store %arg9[%c0_24, %c0_25, %c0_26], %15 {strides = array<i32>} : memref<2x1x16xf32, #tpu.memory_space<vmem>>, vector<2x1x16xf32>,
      %c0_27 = arith.constant 0 : index
      %c0_28 = arith.constant 0 : index
      %c0_29 = arith.constant 0 : index
      %28 = vector.load %arg10[%c0_27, %c0_28, %c0_29] : memref<2x8x16xf32, #tpu.memory_space<vmem>>, vector<2x8x16xf32>
      tpu.vector_store %arg10[%c0_27, %c0_28, %c0_29], %16 {strides = array<i32>} : memref<2x8x16xf32, #tpu.memory_space<vmem>>, vector<2x8x16xf32>,
    } else {
    }
    %c0_i32_17 = arith.constant 0 : i32
    %20 = arith.cmpi sgt, %arg2, %c0_i32_17 : i32
    %21 = arith.extui %20 : i1 to i32
    %c0_i32_18 = arith.constant 0 : i32
    %22 = arith.cmpi ne, %21, %c0_i32_18 : i32
    scf.if %22 {
      %27 = arith.subf %7, %10 : vector<2x1x16xf32>
      %28 = math.exp %27 : vector<2x1x16xf32>
      %c0_24 = arith.constant 0 : index
      %c0_25 = arith.constant 0 : index
      %c0_26 = arith.constant 0 : index
      %29 = vector.load %arg9[%c0_24, %c0_25, %c0_26] : memref<2x1x16xf32, #tpu.memory_space<vmem>>, vector<2x1x16xf32>
      %30 = arith.mulf %28, %29 : vector<2x1x16xf32>
      %31 = arith.addf %30, %15 : vector<2x1x16xf32>
      %c0_27 = arith.constant 0 : index
      %c0_28 = arith.constant 0 : index
      %c0_29 = arith.constant 0 : index
      %32 = vector.load %arg9[%c0_27, %c0_28, %c0_29] : memref<2x1x16xf32, #tpu.memory_space<vmem>>, vector<2x1x16xf32>
      tpu.vector_store %arg9[%c0_27, %c0_28, %c0_29], %31 {strides = array<i32>} : memref<2x1x16xf32, #tpu.memory_space<vmem>>, vector<2x1x16xf32>,
      %c0_30 = arith.constant 0 : index
      %c0_31 = arith.constant 0 : index
      %c0_32 = arith.constant 0 : index
      %33 = vector.load %arg10[%c0_30, %c0_31, %c0_32] : memref<2x8x16xf32, #tpu.memory_space<vmem>>, vector<2x8x16xf32>
      %34 = vector.broadcast %28 : vector<2x1x16xf32> to vector<2x8x16xf32>
      %35 = arith.mulf %34, %33 : vector<2x8x16xf32>
      %36 = arith.addf %35, %16 : vector<2x8x16xf32>
      %c0_33 = arith.constant 0 : index
      %c0_34 = arith.constant 0 : index
      %c0_35 = arith.constant 0 : index
      %37 = vector.load %arg10[%c0_33, %c0_34, %c0_35] : memref<2x8x16xf32, #tpu.memory_space<vmem>>, vector<2x8x16xf32>
      tpu.vector_store %arg10[%c0_33, %c0_34, %c0_35], %36 {strides = array<i32>} : memref<2x8x16xf32, #tpu.memory_space<vmem>>, vector<2x8x16xf32>,
    } else {
    }
    %c0_19 = arith.constant 0 : index
    %c0_20 = arith.constant 0 : index
    %c0_21 = arith.constant 0 : index
    %23 = vector.load %arg8[%c0_19, %c0_20, %c0_21] : memref<2x1x16xf32, #tpu.memory_space<vmem>>, vector<2x1x16xf32>
    tpu.vector_store %arg8[%c0_19, %c0_20, %c0_21], %10 {strides = array<i32>} : memref<2x1x16xf32, #tpu.memory_space<vmem>>, vector<2x1x16xf32>,
    %c0_i32_22 = arith.constant 0 : i32
    %24 = arith.cmpi eq, %arg2, %c0_i32_22 : i32
    %25 = arith.extui %24 : i1 to i32
    %c0_i32_23 = arith.constant 0 : i32
    %26 = arith.cmpi ne, %25, %c0_i32_23 : i32
    scf.if %26 {
      %c0_24 = arith.constant 0 : index
      %c0_25 = arith.constant 0 : index
      %c0_26 = arith.constant 0 : index
      %27 = vector.load %arg9[%c0_24, %c0_25, %c0_26] : memref<2x1x16xf32, #tpu.memory_space<vmem>>, vector<2x1x16xf32>
      %28 = tpu.reciprocal %27 : vector<2x1x16xf32> -> vector<2x1x16xf32>
      %c0_27 = arith.constant 0 : index
      %c0_28 = arith.constant 0 : index
      %c0_29 = arith.constant 0 : index
      %29 = vector.load %arg10[%c0_27, %c0_28, %c0_29] : memref<2x8x16xf32, #tpu.memory_space<vmem>>, vector<2x8x16xf32>
      %30 = vector.broadcast %28 : vector<2x1x16xf32> to vector<2x8x16xf32>
      %31 = arith.mulf %29, %30 : vector<2x8x16xf32>
      %c0_30 = arith.constant 0 : index
      %c0_31 = arith.constant 0 : index
      %c0_32 = arith.constant 0 : index
      %32 = vector.load %arg6[%c0_30, %c0_31, %c0_32] : memref<2x8x16xf32, #tpu.memory_space<vmem>>, vector<2x8x16xf32>
      tpu.vector_store %arg6[%c0_30, %c0_31, %c0_32], %31 {strides = array<i32>} : memref<2x8x16xf32, #tpu.memory_space<vmem>>, vector<2x8x16xf32>,
    } else {
    }
    return
  }
  func.func @transform_0(%arg0: i32, %arg1: i32, %arg2: i32) -> (i32, i32, i32) {
    %c0_i32 = arith.constant 0 : i32
    %c0_i32_0 = arith.constant 0 : i32
    return %arg0, %c0_i32, %arg1 : i32, i32, i32
  }
  func.func @transform_1(%arg0: i32, %arg1: i32, %arg2: i32) -> (i32, i32, i32) {
    %c1_i32 = arith.constant 1 : i32
    %c0_i32 = arith.constant 0 : i32
    return %arg0, %c1_i32, %arg2 : i32, i32, i32
  }
  func.func @transform_2(%arg0: i32, %arg1: i32, %arg2: i32) -> (i32, i32, i32) {
    %c2_i32 = arith.constant 2 : i32
    %c0_i32 = arith.constant 0 : i32
    return %arg0, %c2_i32, %arg2 : i32, i32, i32
  }
  func.func @transform_3(%arg0: i32, %arg1: i32, %arg2: i32) -> (i32, i32, i32) {
    %c0_i32 = arith.constant 0 : i32
    %c0_i32_0 = arith.constant 0 : i32
    return %arg0, %c0_i32, %arg1 : i32, i32, i32
  }
}

</mosaic_0001>

<llo_original>
// kernel: tpu_custom_call.1
$region0: #{tpu_custom_call.1}
  #allocation0 [shape = 'u32[]', space=smem, size = 0x4, offset = 0x4, fixed_abs, tag = 'smem constant byte address 0x4 - core index']
  #allocation1 [shape = 'u32[144,128]{1,0:T(1,128)}', space=vmem, size = 0x12000, scoped, tag = 'internal scratch']
  #allocation2 [shape = 'f32[2,8,16]{2,1,0:T(8,128)}', space=vmem, size = 0x2000, scoped, tag = 'scratch operand']
  #allocation3 [shape = 'f32[2,1,16]{2,1,0:T(1,128)}', space=vmem, size = 0x400, scoped, tag = 'scratch operand']
  #allocation4 [shape = 'f32[2,1,16]{2,1,0:T(1,128)}', space=vmem, size = 0x400, scoped, tag = 'scratch operand']
  #allocation5 [shape = 'f32[2,8,16]{2,1,0:T(8,128)}', space=vmem, size = 0x2000, scoped, tag = 'scratch operand']
  %s0 = inlined_call_operand.vmem [shape: f32[4,24,16], index: 0, kind: input, shape index: {}]
  %s1 = inlined_call_operand.vmem [shape: f32[4,24,16], index: 1, kind: input, shape index: {}]
  %s2 = inlined_call_operand.vmem [shape: f32[4,24,16], index: 2, kind: input, shape index: {}]
  %s3 = inlined_call_operand.hbm [shape: f32[4,8,16], index: 3, kind: output, shape index: {}]
  %s4 = sld [smem:[#allocation0]]
  $region175: #{tpu_custom_call.1} parent=0
    _
  %s6 = ssub.s32 1, %s4
  %s7 = scalar_select 0, %s6, %s4
  $region1: #{tpu_custom_call.1} parent=0
    #allocation6 [shape = 'u8[16384]{0}', space=vmem, size = 0x4000, scoped, tag = 'input window, operand 0']
    #allocation7 [shape = 'u8[16384]{0}', space=vmem, size = 0x4000, scoped, tag = 'input window, operand 1']
    #allocation8 [shape = 'u8[16384]{0}', space=vmem, size = 0x4000, scoped, tag = 'input window, operand 2']
    #allocation9 [shape = 'u8[16384]{0}', space=vmem, size = 0x4000, scoped, tag = 'output window, operand 0']
    #allocation10 [shape = 's32[2]{0}', space=sflag, size = 0x8, scoped, tag = 'scoped memory for tpu_custom_call.1']
    %8 = vsyncpa [#allocation10], 0
    %s9 = scalar_lea.sflag [#allocation10], 1
    %10 = vsyncpa %s9, 0
    loop: start=0, step=1, limit=4
    $region2: #{tpu_custom_call.1} parent=1 // loop_pre_header
      _
    $region3: #{tpu_custom_call.1} parent=1 // loop_header
      %s12 = sphi 0, %s16
      %p13 = scmp.ge.s32.totalorder %s12, 4
      %s19 = sphi 0, %s38
      %s20 = sphi 0, %s34
      %s21 = sphi 0, %s30
      %s22 = sphi 0, %s19
      %s23 = sphi 0, %s20
      %s24 = sphi 0, %s21
      %s25 = sphi 0, %s22
      %s26 = sphi 0, %s23
      %s27 = sphi 0, %s24
      %s43 = sphi 0, %s45
      %s46 = sphi 0, %s43
      %s47 = sphi 0, %s46
      %s63 = sphi 0, %s47
      %s71 = sphi 0, %s73
      %s74 = sphi 0, %s71
      %s75 = sphi 0, %s74
      %s91 = sphi 0, %s75
      %s99 = sphi 0, %s101
      %s102 = sphi 0, %s99
      %s103 = sphi 0, %s102
      %s119 = sphi 0, %s103
      %s127 = sphi 0, %s129
      %s130 = sphi 0, %s127
      %s131 = sphi 0, %s130
      %s147 = sphi 0, %s131
    $region4: #{tpu_custom_call.1} parent=1 // loop_header_branch
      %15 = sbr.rel (%p13) target = $region8
    $region5: #{tpu_custom_call.1} parent=1 // loop_body
      %s17 = ssub.s32 %s12, 1
      %s18 = ssub.s32 %s12, 2
      %s28 = sadd.s32 1, %s21
      %p29 = scmp.ge.s32.totalorder %s28, 1
      %s30 = scalar_select %p29, 0, %s28
      %s31 = sadd.s32 1, %s20
      %s32 = scalar_select %p29, %s31, %s20
      %p33 = scmp.ge.s32.totalorder %s32, 1
      %s34 = scalar_select %p33, 0, %s32
      %s35 = sadd.s32 1, %s19
      %s36 = scalar_select %p33, %s35, %s19
      %p37 = scmp.ge.s32.totalorder %s36, 2
      %s38 = scalar_select %p37, 0, %s36
      %s39 = ssub.s32 %s19, %s38
      %s40 = ssub.s32 %s20, %s34
      %s41 = sor.u32 %s39, %s40
      %p42 = scmp.eq.s32.totalorder %s41, 0
      %s44 = sadd.s32 %s43, 1
      %s45 = scalar_select %p42, %s43, %s44
      %p48 = pneg %p42
      %p49 = scmp.eq.s32.totalorder %s12, 1
      %p50 = por %p48, %p49
      %p51 = scmp.ne.s32.totalorder %s43, %s46
      %p52 = scmp.eq.s32.totalorder %s12, 0
      %p53 = por %p51, %p52
      %p54 = scmp.ne.s32.totalorder %s43, %s46
      %p55 = scmp.eq.s32.totalorder %s17, 1
      %p56 = por %p54, %p55
      %p57 = scmp.ne.s32.totalorder %s46, %s47
      %p58 = scmp.eq.s32.totalorder %s17, 0
      %p59 = por %p57, %p58
      %p60 = scmp.ne.s32.totalorder %s46, %s47
      %p61 = scmp.eq.s32.totalorder %s18, 1
      %p62 = por %p60, %p61
      %p64 = scmp.ne.s32.totalorder %s47, %s63
      %p65 = scmp.eq.s32.totalorder %s18, 0
      %p66 = por %p64, %p65
      %s67 = ssub.s32 %s19, %s38
      %s68 = ssub.s32 %s21, %s30
      %s69 = sor.u32 %s67, %s68
      %p70 = scmp.eq.s32.totalorder %s69, 0
      %s72 = sadd.s32 %s71, 1
      %s73 = scalar_select %p70, %s71, %s72
      %p76 = pneg %p70
      %p77 = scmp.eq.s32.totalorder %s12, 1
      %p78 = por %p76, %p77
      %p79 = scmp.ne.s32.totalorder %s71, %s74
      %p80 = scmp.eq.s32.totalorder %s12, 0
      %p81 = por %p79, %p80
      %p82 = scmp.ne.s32.totalorder %s71, %s74
      %p83 = scmp.eq.s32.totalorder %s17, 1
      %p84 = por %p82, %p83
      %p85 = scmp.ne.s32.totalorder %s74, %s75
      %p86 = scmp.eq.s32.totalorder %s17, 0
      %p87 = por %p85, %p86
      %p88 = scmp.ne.s32.totalorder %s74, %s75
      %p89 = scmp.eq.s32.totalorder %s18, 1
      %p90 = por %p88, %p89
      %p92 = scmp.ne.s32.totalorder %s75, %s91
      %p93 = scmp.eq.s32.totalorder %s18, 0
      %p94 = por %p92, %p93
      %s95 = ssub.s32 %s19, %s38
      %s96 = ssub.s32 %s21, %s30
      %s97 = sor.u32 %s95, %s96
      %p98 = scmp.eq.s32.totalorder %s97, 0
      %s100 = sadd.s32 %s99, 1
      %s101 = scalar_select %p98, %s99, %s100
      %p104 = pneg %p98
      %p105 = scmp.eq.s32.totalorder %s12, 1
      %p106 = por %p104, %p105
      %p107 = scmp.ne.s32.totalorder %s99, %s102
      %p108 = scmp.eq.s32.totalorder %s12, 0
      %p109 = por %p107, %p108
      %p110 = scmp.ne.s32.totalorder %s99, %s102
      %p111 = scmp.eq.s32.totalorder %s17, 1
      %p112 = por %p110, %p111
      %p113 = scmp.ne.s32.totalorder %s102, %s103
      %p114 = scmp.eq.s32.totalorder %s17, 0
      %p115 = por %p113, %p114
      %p116 = scmp.ne.s32.totalorder %s102, %s103
      %p117 = scmp.eq.s32.totalorder %s18, 1
      %p118 = por %p116, %p117
      %p120 = scmp.ne.s32.totalorder %s103, %s119
      %p121 = scmp.eq.s32.totalorder %s18, 0
      %p122 = por %p120, %p121
      %s123 = ssub.s32 %s19, %s38
      %s124 = ssub.s32 %s20, %s34
      %s125 = sor.u32 %s123, %s124
      %p126 = scmp.eq.s32.totalorder %s125, 0
      %s128 = sadd.s32 %s127, 1
      %s129 = scalar_select %p126, %s127, %s128
      %p132 = pneg %p126
      %p133 = scmp.eq.s32.totalorder %s12, 1
      %p134 = por %p132, %p133
      %p135 = scmp.ne.s32.totalorder %s127, %s130
      %p136 = scmp.eq.s32.totalorder %s12, 0
      %p137 = por %p135, %p136
      %p138 = scmp.ne.s32.totalorder %s127, %s130
      %p139 = scmp.eq.s32.totalorder %s17, 1
      %p140 = por %p138, %p139
      %p141 = scmp.ne.s32.totalorder %s130, %s131
      %p142 = scmp.eq.s32.totalorder %s17, 0
      %p143 = por %p141, %p142
      %p144 = scmp.ne.s32.totalorder %s130, %s131
      %p145 = scmp.eq.s32.totalorder %s18, 1
      %p146 = por %p144, %p145
      %p148 = scmp.ne.s32.totalorder %s131, %s147
      %p149 = scmp.eq.s32.totalorder %s18, 0
      %p150 = por %p148, %p149
      %p151 = scmp.le.s32.totalorder 1, %s12
      %p152 = scmp.lt.s32.totalorder %s12, 3
      %p153 = pnand %p151, %p152
      %p154 = pneg %p153
      // Predicated region
      $region9: #{tpu_custom_call.1} parent=5 // pred_check
        _
      $region10: #{tpu_custom_call.1} parent=5 // pred_check_branch
        %156 = sbr.rel (%p153) target = $region12
      $region11: #{tpu_custom_call.1} parent=5 // pred_region
        %s157 = ssub.s32 %s12, 1
      $region12: #{tpu_custom_call.1} parent=5 // pred_fallthru
        _
      %p158 = scmp.lt.s32.totalorder %s12, 2
      // Predicated region
      $region13: #{tpu_custom_call.1} parent=5 // pred_check
        %p159 = pneg %p158
      $region14: #{tpu_custom_call.1} parent=5 // pred_check_branch
        %161 = sbr.rel (%p159) target = $region16
      $region15: #{tpu_custom_call.1} parent=5 // pred_region
        // Predicated region
        $region17: #{tpu_custom_call.1} parent=15 // pred_check
          %p162 = pneg %p53
        $region18: #{tpu_custom_call.1} parent=15 // pred_check_branch
          %164 = sbr.rel (%p162) target = $region20
        $region19: #{tpu_custom_call.1} parent=15 // pred_region
          %s165 = sand.u32 %s43, 1
          %s166 = sand.u32 %s43, 1
          %s167 = smul.addr %s166, 16
          %s168 = scalar_lea.vmem [#allocation6], %s167
          %s169 = smul.u32 2, %s19
          %s170 = smul.addr %s169, 3
          %s171 = sadd.s32 %s20, %s170
          %s172 = smul.addr %s171, 8
          %s173 = scalar_lea.vmem %s0, %s172
          // Predicated region
          $region21: #{tpu_custom_call.1} parent=19 // pred_check
            _
          $region22: #{tpu_custom_call.1} parent=19 // pred_check_branch
            %175 = sbr.rel (0) target = $region24
          $region23: #{tpu_custom_call.1} parent=19 // pred_region
            // Predicated region
            $region25: #{tpu_custom_call.1} parent=23 // pred_check
              _
            $region26: #{tpu_custom_call.1} parent=23 // pred_check_branch
              %177 = sbr.rel (0) target = $region28
            $region27: #{tpu_custom_call.1} parent=23 // pred_region
              // Predicated region
              $region40: #{tpu_custom_call.1} parent=27 // pred_check
                _
              $region41: #{tpu_custom_call.1} parent=27 // pred_check_branch
                %195 = sbr.rel (0) target = $region43
              $region42: #{tpu_custom_call.1} parent=27 // pred_region
                loop: start=0, step=1, limit=1
                $region44: #{tpu_custom_call.1} parent=42 // loop_pre_header
                  _
                $region45: #{tpu_custom_call.1} parent=42 // loop_header
                  %s197 = sphi 0, %s201
                  %p198 = scmp.ge.s32.totalorder %s197, 1
                  %s202 = sphi %s173, %s173
                  %s203 = sphi %s168, %s168
                $region46: #{tpu_custom_call.1} parent=42 // loop_header_branch
                  %200 = sbr.rel (%p198) target = $region50
                $region47: #{tpu_custom_call.1} parent=42 // loop_body
                  %v204 = vld [vmem:[%s202] sm:$0xff]
                  %205 = vst [vmem:[%s203] sm:$0xff] %v204
                  %v206 = vld [vmem:[%s202 + $0x18] sm:$0xff]
                  %207 = vst [vmem:[%s203 + $0x8] sm:$0xff] %v206
                $region48: #{tpu_custom_call.1} parent=42 // loop_footer
                  %s201 = sadd.s32 1, %s197
                $region49: #{tpu_custom_call.1} parent=42 // loop_footer_branch
                  %196 = sbr.rel target = $region45
                $region50: #{tpu_custom_call.1} parent=42 // loop_exit
                  _
              $region43: #{tpu_custom_call.1} parent=27 // pred_fallthru
                _
              // Predicated region
              $region51: #{tpu_custom_call.1} parent=27 // pred_check
                _
              $region52: #{tpu_custom_call.1} parent=27 // pred_check_branch
                %209 = sbr.rel target = $region54
              $region53: #{tpu_custom_call.1} parent=27 // pred_region
                _
              $region54: #{tpu_custom_call.1} parent=27 // pred_fallthru
                _
            $region28: #{tpu_custom_call.1} parent=23 // pred_fallthru
              _
            // Predicated region
            $region29: #{tpu_custom_call.1} parent=23 // pred_check
              _
            $region30: #{tpu_custom_call.1} parent=23 // pred_check_branch
              %179 = sbr.rel target = $region32
            $region31: #{tpu_custom_call.1} parent=23 // pred_region
              %s181 = ssub.s32 256, 1
              loop: start=0, step=1, limit=1
              $region33: #{tpu_custom_call.1} parent=31 // loop_pre_header
                _
              $region34: #{tpu_custom_call.1} parent=31 // loop_header
                %s183 = sphi 0, %s187
                %p184 = scmp.ge.s32.totalorder %s183, 1
                %s188 = sphi %s173, %s173
                %s189 = sphi %s168, %s168
              $region35: #{tpu_custom_call.1} parent=31 // loop_header_branch
                %186 = sbr.rel (%p184) target = $region39
              $region36: #{tpu_custom_call.1} parent=31 // loop_body
                %v190 = vld [vmem:[%s188] sm:%s181]
                %191 = vst [vmem:[%s189] sm:%s181] %v190
                %v192 = vld [vmem:[%s188 + $0x18] sm:%s181]
                %193 = vst [vmem:[%s189 + $0x8] sm:%s181] %v192
              $region37: #{tpu_custom_call.1} parent=31 // loop_footer
                %s187 = sadd.s32 1, %s183
              $region38: #{tpu_custom_call.1} parent=31 // loop_footer_branch
                %182 = sbr.rel target = $region34
              $region39: #{tpu_custom_call.1} parent=31 // loop_exit
                _
            $region32: #{tpu_custom_call.1} parent=23 // pred_fallthru
              _
          $region24: #{tpu_custom_call.1} parent=19 // pred_fallthru
            _
          %210 = vnop
        $region20: #{tpu_custom_call.1} parent=15 // pred_fallthru
          _
        // Predicated region
        $region55: #{tpu_custom_call.1} parent=15 // pred_check
          %p211 = pneg %p81
        $region56: #{tpu_custom_call.1} parent=15 // pred_check_branch
          %213 = sbr.rel (%p211) target = $region58
        $region57: #{tpu_custom_call.1} parent=15 // pred_region
          %s214 = sand.u32 %s71, 1
          %s215 = sand.u32 %s71, 1
          %s216 = smul.addr %s215, 16
          %s217 = scalar_lea.vmem [#allocation7], %s216
          %s218 = smul.u32 2, %s19
          %s219 = sadd.s32 %s21, 1
          %s220 = smul.addr %s218, 3
          %s221 = sadd.s32 %s219, %s220
          %s222 = smul.addr %s221, 8
          %s223 = scalar_lea.vmem %s1, %s222
          // Predicated region
          $region59: #{tpu_custom_call.1} parent=57 // pred_check
            _
          $region60: #{tpu_custom_call.1} parent=57 // pred_check_branch
            %225 = sbr.rel (0) target = $region62
          $region61: #{tpu_custom_call.1} parent=57 // pred_region
            // Predicated region
            $region63: #{tpu_custom_call.1} parent=61 // pred_check
              _
            $region64: #{tpu_custom_call.1} parent=61 // pred_check_branch
              %227 = sbr.rel (0) target = $region66
            $region65: #{tpu_custom_call.1} parent=61 // pred_region
              // Predicated region
              $region78: #{tpu_custom_call.1} parent=65 // pred_check
                _
              $region79: #{tpu_custom_call.1} parent=65 // pred_check_branch
                %245 = sbr.rel (0) target = $region81
              $region80: #{tpu_custom_call.1} parent=65 // pred_region
                loop: start=0, step=1, limit=1
                $region82: #{tpu_custom_call.1} parent=80 // loop_pre_header
                  _
                $region83: #{tpu_custom_call.1} parent=80 // loop_header
                  %s247 = sphi 0, %s251
                  %p248 = scmp.ge.s32.totalorder %s247, 1
                  %s252 = sphi %s223, %s223
                  %s253 = sphi %s217, %s217
                $region84: #{tpu_custom_call.1} parent=80 // loop_header_branch
                  %250 = sbr.rel (%p248) target = $region88
                $region85: #{tpu_custom_call.1} parent=80 // loop_body
                  %v254 = vld [vmem:[%s252] sm:$0xff]
                  %255 = vst [vmem:[%s253] sm:$0xff] %v254
                  %v256 = vld [vmem:[%s252 + $0x18] sm:$0xff]
                  %257 = vst [vmem:[%s253 + $0x8] sm:$0xff] %v256
                $region86: #{tpu_custom_call.1} parent=80 // loop_footer
                  %s251 = sadd.s32 1, %s247
                $region87: #{tpu_custom_call.1} parent=80 // loop_footer_branch
                  %246 = sbr.rel target = $region83
                $region88: #{tpu_custom_call.1} parent=80 // loop_exit
                  _
              $region81: #{tpu_custom_call.1} parent=65 // pred_fallthru
                _
              // Predicated region
              $region89: #{tpu_custom_call.1} parent=65 // pred_check
                _
              $region90: #{tpu_custom_call.1} parent=65 // pred_check_branch
                %259 = sbr.rel target = $region92
              $region91: #{tpu_custom_call.1} parent=65 // pred_region
                _
              $region92: #{tpu_custom_call.1} parent=65 // pred_fallthru
                _
            $region66: #{tpu_custom_call.1} parent=61 // pred_fallthru
              _
            // Predicated region
            $region67: #{tpu_custom_call.1} parent=61 // pred_check
              _
            $region68: #{tpu_custom_call.1} parent=61 // pred_check_branch
              %229 = sbr.rel target = $region70
            $region69: #{tpu_custom_call.1} parent=61 // pred_region
              %s231 = ssub.s32 256, 1
              loop: start=0, step=1, limit=1
              $region71: #{tpu_custom_call.1} parent=69 // loop_pre_header
                _
              $region72: #{tpu_custom_call.1} parent=69 // loop_header
                %s233 = sphi 0, %s237
                %p234 = scmp.ge.s32.totalorder %s233, 1
                %s238 = sphi %s223, %s223
                %s239 = sphi %s217, %s217
              $region73: #{tpu_custom_call.1} parent=69 // loop_header_branch
                %236 = sbr.rel (%p234) target = $region77
              $region74: #{tpu_custom_call.1} parent=69 // loop_body
                %v240 = vld [vmem:[%s238] sm:%s231]
                %241 = vst [vmem:[%s239] sm:%s231] %v240
                %v242 = vld [vmem:[%s238 + $0x18] sm:%s231]
                %243 = vst [vmem:[%s239 + $0x8] sm:%s231] %v242
              $region75: #{tpu_custom_call.1} parent=69 // loop_footer
                %s237 = sadd.s32 1, %s233
              $region76: #{tpu_custom_call.1} parent=69 // loop_footer_branch
                %232 = sbr.rel target = $region72
              $region77: #{tpu_custom_call.1} parent=69 // loop_exit
                _
            $region70: #{tpu_custom_call.1} parent=61 // pred_fallthru
              _
          $region62: #{tpu_custom_call.1} parent=57 // pred_fallthru
            _
          %260 = vnop
        $region58: #{tpu_custom_call.1} parent=15 // pred_fallthru
          _
        // Predicated region
        $region93: #{tpu_custom_call.1} parent=15 // pred_check
          %p261 = pneg %p109
        $region94: #{tpu_custom_call.1} parent=15 // pred_check_branch
          %263 = sbr.rel (%p261) target = $region96
        $region95: #{tpu_custom_call.1} parent=15 // pred_region
          %s264 = sand.u32 %s99, 1
          %s265 = sand.u32 %s99, 1
          %s266 = smul.addr %s265, 16
          %s267 = scalar_lea.vmem [#allocation8], %s266
          %s268 = smul.u32 2, %s19
          %s269 = sadd.s32 %s21, 2
          %s270 = smul.addr %s268, 3
          %s271 = sadd.s32 %s269, %s270
          %s272 = smul.addr %s271, 8
          %s273 = scalar_lea.vmem %s2, %s272
          // Predicated region
          $region97: #{tpu_custom_call.1} parent=95 // pred_check
            _
          $region98: #{tpu_custom_call.1} parent=95 // pred_check_branch
            %275 = sbr.rel (0) target = $region100
          $region99: #{tpu_custom_call.1} parent=95 // pred_region
            // Predicated region
            $region101: #{tpu_custom_call.1} parent=99 // pred_check
              _
            $region102: #{tpu_custom_call.1} parent=99 // pred_check_branch
              %277 = sbr.rel (0) target = $region104
            $region103: #{tpu_custom_call.1} parent=99 // pred_region
              // Predicated region
              $region116: #{tpu_custom_call.1} parent=103 // pred_check
                _
              $region117: #{tpu_custom_call.1} parent=103 // pred_check_branch
                %295 = sbr.rel (0) target = $region119
              $region118: #{tpu_custom_call.1} parent=103 // pred_region
                loop: start=0, step=1, limit=1
                $region120: #{tpu_custom_call.1} parent=118 // loop_pre_header
                  _
                $region121: #{tpu_custom_call.1} parent=118 // loop_header
                  %s297 = sphi 0, %s301
                  %p298 = scmp.ge.s32.totalorder %s297, 1
                  %s302 = sphi %s273, %s273
                  %s303 = sphi %s267, %s267
                $region122: #{tpu_custom_call.1} parent=118 // loop_header_branch
                  %300 = sbr.rel (%p298) target = $region126
                $region123: #{tpu_custom_call.1} parent=118 // loop_body
                  %v304 = vld [vmem:[%s302] sm:$0xff]
                  %305 = vst [vmem:[%s303] sm:$0xff] %v304
                  %v306 = vld [vmem:[%s302 + $0x18] sm:$0xff]
                  %307 = vst [vmem:[%s303 + $0x8] sm:$0xff] %v306
                $region124: #{tpu_custom_call.1} parent=118 // loop_footer
                  %s301 = sadd.s32 1, %s297
                $region125: #{tpu_custom_call.1} parent=118 // loop_footer_branch
                  %296 = sbr.rel target = $region121
                $region126: #{tpu_custom_call.1} parent=118 // loop_exit
                  _
              $region119: #{tpu_custom_call.1} parent=103 // pred_fallthru
                _
              // Predicated region
              $region127: #{tpu_custom_call.1} parent=103 // pred_check
                _
              $region128: #{tpu_custom_call.1} parent=103 // pred_check_branch
                %309 = sbr.rel target = $region130
              $region129: #{tpu_custom_call.1} parent=103 // pred_region
                _
              $region130: #{tpu_custom_call.1} parent=103 // pred_fallthru
                _
            $region104: #{tpu_custom_call.1} parent=99 // pred_fallthru
              _
            // Predicated region
            $region105: #{tpu_custom_call.1} parent=99 // pred_check
              _
            $region106: #{tpu_custom_call.1} parent=99 // pred_check_branch
              %279 = sbr.rel target = $region108
            $region107: #{tpu_custom_call.1} parent=99 // pred_region
              %s281 = ssub.s32 256, 1
              loop: start=0, step=1, limit=1
              $region109: #{tpu_custom_call.1} parent=107 // loop_pre_header
                _
              $region110: #{tpu_custom_call.1} parent=107 // loop_header
                %s283 = sphi 0, %s287
                %p284 = scmp.ge.s32.totalorder %s283, 1
                %s288 = sphi %s273, %s273
                %s289 = sphi %s267, %s267
              $region111: #{tpu_custom_call.1} parent=107 // loop_header_branch
                %286 = sbr.rel (%p284) target = $region115
              $region112: #{tpu_custom_call.1} parent=107 // loop_body
                %v290 = vld [vmem:[%s288] sm:%s281]
                %291 = vst [vmem:[%s289] sm:%s281] %v290
                %v292 = vld [vmem:[%s288 + $0x18] sm:%s281]
                %293 = vst [vmem:[%s289 + $0x8] sm:%s281] %v292
              $region113: #{tpu_custom_call.1} parent=107 // loop_footer
                %s287 = sadd.s32 1, %s283
              $region114: #{tpu_custom_call.1} parent=107 // loop_footer_branch
                %282 = sbr.rel target = $region110
              $region115: #{tpu_custom_call.1} parent=107 // loop_exit
                _
            $region108: #{tpu_custom_call.1} parent=99 // pred_fallthru
              _
          $region100: #{tpu_custom_call.1} parent=95 // pred_fallthru
            _
          %310 = vnop
        $region96: #{tpu_custom_call.1} parent=15 // pred_fallthru
          _
      $region16: #{tpu_custom_call.1} parent=5 // pred_fallthru
        _
      %p311 = scmp.le.s32.totalorder 1, %s12
      %p312 = scmp.lt.s32.totalorder %s12, 3
      %p313 = pnand %p311, %p312
      %p314 = pneg %p313
      // Predicated region
      $region131: #{tpu_custom_call.1} parent=5 // pred_check
        _
      $region132: #{tpu_custom_call.1} parent=5 // pred_check_branch
        %316 = sbr.rel (%p313) target = $region134
      $region133: #{tpu_custom_call.1} parent=5 // pred_region
        %s317 = ssub.s32 %s12, 1
        %s318 = sand.u32 %s46, 1
        %s319 = sand.u32 %s46, 1
        %s320 = smul.addr %s319, 16
        %s321 = scalar_lea.vmem [#allocation6], %s320
        // Predicated region
        $region135: #{tpu_custom_call.1} parent=133 // pred_check
          %p322 = pneg %p59
        $region136: #{tpu_custom_call.1} parent=133 // pred_check_branch
          %324 = sbr.rel (%p322) target = $region138
        $region137: #{tpu_custom_call.1} parent=133 // pred_region
          _
        $region138: #{tpu_custom_call.1} parent=133 // pred_fallthru
          _
        %s325 = sand.u32 %s74, 1
        %s326 = sand.u32 %s74, 1
        %s327 = smul.addr %s326, 16
        %s328 = scalar_lea.vmem [#allocation7], %s327
        // Predicated region
        $region139: #{tpu_custom_call.1} parent=133 // pred_check
          %p329 = pneg %p87
        $region140: #{tpu_custom_call.1} parent=133 // pred_check_branch
          %331 = sbr.rel (%p329) target = $region142
        $region141: #{tpu_custom_call.1} parent=133 // pred_region
          _
        $region142: #{tpu_custom_call.1} parent=133 // pred_fallthru
          _
        %s332 = sand.u32 %s102, 1
        %s333 = sand.u32 %s102, 1
        %s334 = smul.addr %s333, 16
        %s335 = scalar_lea.vmem [#allocation8], %s334
        // Predicated region
        $region143: #{tpu_custom_call.1} parent=133 // pred_check
          %p336 = pneg %p115
        $region144: #{tpu_custom_call.1} parent=133 // pred_check_branch
          %338 = sbr.rel (%p336) target = $region146
        $region145: #{tpu_custom_call.1} parent=133 // pred_region
          _
        $region146: #{tpu_custom_call.1} parent=133 // pred_fallthru
          _
        %s339 = sand.u32 %s46, 1
        %s340 = sand.u32 %s46, 1
        %s341 = smul.addr %s340, 16
        %s342 = scalar_lea.vmem [#allocation6], %s341
        %p343 = pneg %p59
        %p344 = pneg %p56
        %s345 = sand.u32 %s74, 1
        %s346 = sand.u32 %s74, 1
        %s347 = smul.addr %s346, 16
        %s348 = scalar_lea.vmem [#allocation7], %s347
        %p349 = pneg %p87
        %p350 = pneg %p84
        %s351 = sand.u32 %s102, 1
        %s352 = sand.u32 %s102, 1
        %s353 = smul.addr %s352, 16
        %s354 = scalar_lea.vmem [#allocation8], %s353
        %p355 = pneg %p115
        %p356 = pneg %p112
        %p357 = pneg %p143
        %p358 = pneg %p140
        %s359 = sand.u32 %s130, 1
        %s360 = scalar_lea.sflag [#allocation10], %s359
        %s361 = sand.u32 %s130, 1
        %s362 = smul.addr %s361, 16
        %s363 = scalar_lea.vmem [#allocation9], %s362
        %s364 = smul.u32 2, %s22
        %s365 = smul.u32 2, %s22
        %s366 = smul.u32 2, %s22
        %s367 = smul.u32 2, %s22
        %p368 = scmp.eq.s32.totalorder %s24, 0
        // Predicated region
        $region147: #{tpu_custom_call.1} parent=133 // pred_check
          %p369 = pneg %p368
        $region148: #{tpu_custom_call.1} parent=133 // pred_check_branch
          %371 = sbr.rel (%p369) target = $region150
        $region149: #{tpu_custom_call.1} parent=133 // pred_region
          %vm372 = vcmask 122880
          %373 = vst.msk [vmem:[#allocation3] sm:$0x1] %vm372, -inf
          %374 = vst.msk [vmem:[#allocation3 + $0x1] sm:$0x1] %vm372, -inf
          %v375 = vld [vmem:[%s321] sm:$0xff]
          %v376 = vld [vmem:[%s321 + $0x8] sm:$0xff]
          %v377 = vmul.f32 %v375, 0.35355338
          %v378 = vmul.f32 %v376, 0.35355338
          %vm379 = vcmask 130048
          %380 = vst.msk [vmem:[#allocation2] sm:$0xff] %vm379, %v377
          %381 = vst.msk [vmem:[#allocation2 + $0x8] sm:$0xff] %vm379, %v378
        $region150: #{tpu_custom_call.1} parent=133 // pred_fallthru
          _
        %v382 = vld [vmem:[#allocation2] sm:$0xff]
        %v383 = vld [vmem:[#allocation2 + $0x8] sm:$0xff]
        %v384 = vld [vmem:[%s328] sm:$0xff]
        %v385 = vld [vmem:[%s328 + $0x8] sm:$0xff]
        %v386 = vld [vmem:[%s335] sm:$0xff]
        %v387 = vld [vmem:[%s335 + $0x8] sm:$0xff]
        %388 = vxpose.xlu0.b32.start [1/16] %v384, 128
        %389 = vxpose.xlu0.b32.cont [2/16] 0.0, 128
        %390 = vxpose.xlu0.b32.cont [3/16] 0.0, 128
        %391 = vxpose.xlu0.b32.cont [4/16] 0.0, 128
        %392 = vxpose.xlu0.b32.cont [5/16] 0.0, 128
        %393 = vxpose.xlu0.b32.cont [6/16] 0.0, 128
        %394 = vxpose.xlu0.b32.cont [7/16] 0.0, 128
        %395 = vxpose.xlu0.b32.cont [8/16] 0.0, 128
        %396 = vxpose.xlu0.b32.cont [9/16] 0.0, 128
        %397 = vxpose.xlu0.b32.cont [10/16] 0.0, 128
        %398 = vxpose.xlu0.b32.cont [11/16] 0.0, 128
        %399 = vxpose.xlu0.b32.cont [12/16] 0.0, 128
        %400 = vxpose.xlu0.b32.cont [13/16] 0.0, 128
        %401 = vxpose.xlu0.b32.cont [14/16] 0.0, 128
        %402 = vxpose.xlu0.b32.cont [15/16] 0.0, 128
        %403 = vxpose.xlu0.b32.end [16/16] 0.0, 128
        %v404 = vpop.trf.xlu0
        %v405 = vpop.trf.xlu0
        %v406 = vpop.trf.xlu0
        %v407 = vpop.trf.xlu0
        %v408 = vpop.trf.xlu0
        %v409 = vpop.trf.xlu0
        %v410 = vpop.trf.xlu0
        %v411 = vpop.trf.xlu0
        %v412 = vpop.trf.xlu0
        %v413 = vpop.trf.xlu0
        %v414 = vpop.trf.xlu0
        %v415 = vpop.trf.xlu0
        %v416 = vpop.trf.xlu0
        %v417 = vpop.trf.xlu0
        %v418 = vpop.trf.xlu0
        %v419 = vpop.trf.xlu0
        %vm420 = vcmask 64512
        %v422 = vsel %vm420, %v404, 0
        %v425 = vsel %vm420, %v405, 0
        %427 = vmatprep.subr.mxu0 0.0
        %428 = vmatpush1.msra.mxu0 0.0
        %429 = vmatprep.subr.mxu0 0.0
        %430 = vmatpush1.msra.mxu0 0.0
        %431 = vmatprep.subr.mxu0 0.0
        %432 = vmatpush1.msra.mxu0 0.0
        %433 = vmatprep.subr.mxu0 0.0
        %434 = vmatpush1.msra.mxu0 0.0
        %435 = vmatprep.subr.mxu0 0.0
        %436 = vmatpush1.msra.mxu0 0.0
        %437 = vmatprep.subr.mxu0 0.0
        %438 = vmatpush1.msra.mxu0 0.0
        %439 = vmatprep.subr.mxu0 0.0
        %440 = vmatpush1.msra.mxu0 0.0
        %441 = vmatprep.subr.mxu0 0.0
        %442 = vmatpush1.msra.mxu0 0.0
        %443 = vmatprep.subr.mxu0 0.0
        %444 = vmatpush1.msra.mxu0 0.0
        %445 = vmatprep.subr.mxu0 0.0
        %446 = vmatpush1.msra.mxu0 0.0
        %447 = vmatprep.subr.mxu0 0.0
        %448 = vmatpush1.msra.mxu0 0.0
        %449 = vmatprep.subr.mxu0 0.0
        %450 = vmatpush1.msra.mxu0 0.0
        %451 = vmatprep.subr.mxu0 0.0
        %452 = vmatpush1.msra.mxu0 0.0
        %453 = vmatprep.subr.mxu0 0.0
        %454 = vmatpush1.msra.mxu0 0.0
        %455 = vmatprep.subr.mxu0 0.0
        %456 = vmatpush1.msra.mxu0 0.0
        %457 = vmatprep.subr.mxu0 0.0
        %458 = vmatpush1.msra.mxu0 %v382
        %459 = vmatprep.subr.mxu0 0.0
        %460 = vmatpush2.msra.mxu0 0.0
        %461 = vmatprep.subr.mxu0 0.0
        %462 = vmatpush2.msra.mxu0 0.0
        %463 = vmatprep.subr.mxu0 0.0
        %464 = vmatpush2.msra.mxu0 0.0
        %465 = vmatprep.subr.mxu0 0.0
        %466 = vmatpush2.msra.mxu0 0.0
        %467 = vmatprep.subr.mxu0 0.0
        %468 = vmatpush2.msra.mxu0 0.0
        %469 = vmatprep.subr.mxu0 0.0
        %470 = vmatpush2.msra.mxu0 0.0
        %471 = vmatprep.subr.mxu0 0.0
        %472 = vmatpush2.msra.mxu0 0.0
        %473 = vmatprep.subr.mxu0 0.0
        %474 = vmatpush2.msra.mxu0 0.0
        %475 = vmatprep.subr.mxu0 0.0
        %476 = vmatpush2.msra.mxu0 0.0
        %477 = vmatprep.subr.mxu0 0.0
        %478 = vmatpush2.msra.mxu0 0.0
        %479 = vmatprep.subr.mxu0 0.0
        %480 = vmatpush2.msra.mxu0 0.0
        %481 = vmatprep.subr.mxu0 0.0
        %482 = vmatpush2.msra.mxu0 0.0
        %483 = vmatprep.subr.mxu0 0.0
        %484 = vmatpush2.msra.mxu0 0.0
        %485 = vmatprep.subr.mxu0 0.0
        %486 = vmatpush2.msra.mxu0 0.0
        %487 = vmatprep.subr.mxu0 0.0
        %488 = vmatpush2.msra.mxu0 0.0
        %489 = vmatprep.subr.mxu0 0.0
        %490 = vmatpush2.msra.mxu0 0.0
        %491 = vmatprep.mubr.f32.mxu0 0.0
        %492 = vmatmul.mubr.f32.gmra.mxu0 %v422
        %v493 = vpop.f32.mrf.mxu0
        %v494 = vadd.f32 0.0, %v493
        %v495 = vpop.f32.mrf.mxu0
        %496 = vmatprep.mubr.f32.mxu0 0.0
        %497 = vmatmul.mubr.f32.gmra.mxu0 %v425
        %v498 = vpop.f32.mrf.mxu0
        %v499 = vadd.f32 0.0, %v498
        %v500 = vpop.f32.mrf.mxu0
        %501 = vdwg.mxu0
        %502 = vxpose.xlu0.b32.start [1/16] %v385, 128
        %503 = vxpose.xlu0.b32.cont [2/16] 0.0, 128
        %504 = vxpose.xlu0.b32.cont [3/16] 0.0, 128
        %505 = vxpose.xlu0.b32.cont [4/16] 0.0, 128
        %506 = vxpose.xlu0.b32.cont [5/16] 0.0, 128
        %507 = vxpose.xlu0.b32.cont [6/16] 0.0, 128
        %508 = vxpose.xlu0.b32.cont [7/16] 0.0, 128
        %509 = vxpose.xlu0.b32.cont [8/16] 0.0, 128
        %510 = vxpose.xlu0.b32.cont [9/16] 0.0, 128
        %511 = vxpose.xlu0.b32.cont [10/16] 0.0, 128
        %512 = vxpose.xlu0.b32.cont [11/16] 0.0, 128
        %513 = vxpose.xlu0.b32.cont [12/16] 0.0, 128
        %514 = vxpose.xlu0.b32.cont [13/16] 0.0, 128
        %515 = vxpose.xlu0.b32.cont [14/16] 0.0, 128
        %516 = vxpose.xlu0.b32.cont [15/16] 0.0, 128
        %517 = vxpose.xlu0.b32.end [16/16] 0.0, 128
        %v518 = vpop.trf.xlu0
        %v519 = vpop.trf.xlu0
        %v520 = vpop.trf.xlu0
        %v521 = vpop.trf.xlu0
        %v522 = vpop.trf.xlu0
        %v523 = vpop.trf.xlu0
        %v524 = vpop.trf.xlu0
        %v525 = vpop.trf.xlu0
        %v526 = vpop.trf.xlu0
        %v527 = vpop.trf.xlu0
        %v528 = vpop.trf.xlu0
        %v529 = vpop.trf.xlu0
        %v530 = vpop.trf.xlu0
        %v531 = vpop.trf.xlu0
        %v532 = vpop.trf.xlu0
        %v533 = vpop.trf.xlu0
        %v535 = vsel %vm420, %v518, 0
        %v538 = vsel %vm420, %v519, 0
        %540 = vmatprep.subr.mxu0 0.0
        %541 = vmatpush1.msra.mxu0 0.0
        %542 = vmatprep.subr.mxu0 0.0
        %543 = vmatpush1.msra.mxu0 0.0
        %544 = vmatprep.subr.mxu0 0.0
        %545 = vmatpush1.msra.mxu0 0.0
        %546 = vmatprep.subr.mxu0 0.0
        %547 = vmatpush1.msra.mxu0 0.0
        %548 = vmatprep.subr.mxu0 0.0
        %549 = vmatpush1.msra.mxu0 0.0
        %550 = vmatprep.subr.mxu0 0.0
        %551 = vmatpush1.msra.mxu0 0.0
        %552 = vmatprep.subr.mxu0 0.0
        %553 = vmatpush1.msra.mxu0 0.0
        %554 = vmatprep.subr.mxu0 0.0
        %555 = vmatpush1.msra.mxu0 0.0
        %556 = vmatprep.subr.mxu0 0.0
        %557 = vmatpush1.msra.mxu0 0.0
        %558 = vmatprep.subr.mxu0 0.0
        %559 = vmatpush1.msra.mxu0 0.0
        %560 = vmatprep.subr.mxu0 0.0
        %561 = vmatpush1.msra.mxu0 0.0
        %562 = vmatprep.subr.mxu0 0.0
        %563 = vmatpush1.msra.mxu0 0.0
        %564 = vmatprep.subr.mxu0 0.0
        %565 = vmatpush1.msra.mxu0 0.0
        %566 = vmatprep.subr.mxu0 0.0
        %567 = vmatpush1.msra.mxu0 0.0
        %568 = vmatprep.subr.mxu0 0.0
        %569 = vmatpush1.msra.mxu0 0.0
        %570 = vmatprep.subr.mxu0 0.0
        %571 = vmatpush1.msra.mxu0 %v383
        %572 = vmatprep.subr.mxu0 0.0
        %573 = vmatpush2.msra.mxu0 0.0
        %574 = vmatprep.subr.mxu0 0.0
        %575 = vmatpush2.msra.mxu0 0.0
        %576 = vmatprep.subr.mxu0 0.0
        %577 = vmatpush2.msra.mxu0 0.0
        %578 = vmatprep.subr.mxu0 0.0
        %579 = vmatpush2.msra.mxu0 0.0
        %580 = vmatprep.subr.mxu0 0.0
        %581 = vmatpush2.msra.mxu0 0.0
        %582 = vmatprep.subr.mxu0 0.0
        %583 = vmatpush2.msra.mxu0 0.0
        %584 = vmatprep.subr.mxu0 0.0
        %585 = vmatpush2.msra.mxu0 0.0
        %586 = vmatprep.subr.mxu0 0.0
        %587 = vmatpush2.msra.mxu0 0.0
        %588 = vmatprep.subr.mxu0 0.0
        %589 = vmatpush2.msra.mxu0 0.0
        %590 = vmatprep.subr.mxu0 0.0
        %591 = vmatpush2.msra.mxu0 0.0
        %592 = vmatprep.subr.mxu0 0.0
        %593 = vmatpush2.msra.mxu0 0.0
        %594 = vmatprep.subr.mxu0 0.0
        %595 = vmatpush2.msra.mxu0 0.0
        %596 = vmatprep.subr.mxu0 0.0
        %597 = vmatpush2.msra.mxu0 0.0
        %598 = vmatprep.subr.mxu0 0.0
        %599 = vmatpush2.msra.mxu0 0.0
        %600 = vmatprep.subr.mxu0 0.0
        %601 = vmatpush2.msra.mxu0 0.0
        %602 = vmatprep.subr.mxu0 0.0
        %603 = vmatpush2.msra.mxu0 0.0
        %604 = vmatprep.mubr.f32.mxu0 0.0
        %605 = vmatmul.mubr.f32.gmra.mxu0 %v535
        %v606 = vpop.f32.mrf.mxu0
        %v607 = vadd.f32 0.0, %v606
        %v608 = vpop.f32.mrf.mxu0
        %609 = vmatprep.mubr.f32.mxu0 0.0
        %610 = vmatmul.mubr.f32.gmra.mxu0 %v538
        %v611 = vpop.f32.mrf.mxu0
        %v612 = vadd.f32 0.0, %v611
        %v613 = vpop.f32.mrf.mxu0
        %614 = vdwg.mxu0
        %v615 = vld [vmem:[#allocation3] sm:$0x1]
        %v616 = vld [vmem:[#allocation3 + $0x1] sm:$0x1]
        %vm617 = vcmask 130048
        %v618 = vsel %vm617, %v494, -inf
        %v619 = vsel %vm617, %v499, -inf
        %v620 = vmax.f32 %v618, %v619
        %v621 = vrot.slane %v620, 4
        %v622 = vmax.f32 %v620, %v621
        %v623 = vrot.slane %v622, 2
        %v624 = vmax.f32 %v622, %v623
        %v625 = vrot.slane %v624, 1
        %v626 = vmax.f32 %v624, %v625
        %v627 = vsel %vm617, %v607, -inf
        %v628 = vsel %vm617, %v612, -inf
        %v629 = vmax.f32 %v627, %v628
        %v630 = vrot.slane %v629, 4
        %v631 = vmax.f32 %v629, %v630
        %v632 = vrot.slane %v631, 2
        %v633 = vmax.f32 %v631, %v632
        %v634 = vrot.slane %v633, 1
        %v635 = vmax.f32 %v633, %v634
        %v636 = vmax.f32 %v615, %v626
        %v637 = vmax.f32 %v616, %v635
        %v640 = vlaneseq
        %v641 = vshrl.u32 %v640, 7
        %v642 = vsub.s32 0, %v641
        %v643 = vrot.slane %v636, %v642
        %v644 = vlaneseq
        %v645 = vshrl.u32 %v644, 7
        %v646 = vsub.s32 0, %v645
        %v647 = vrot.slane %v637, %v646
        %v650 = vsub.f32 %v494, %v643
        %v651 = vsub.f32 %v499, %v643
        %v652 = vsub.f32 %v607, %v647
        %v653 = vsub.f32 %v612, %v647
        %v654 = vmul.f32 %v650, 1.442695
        %v655 = vpow.pop %v654
        %v656 = vmul.f32 %v651, 1.442695
        %v657 = vpow.pop %v656
        %v658 = vmul.f32 %v652, 1.442695
        %v659 = vpow.pop %v658
        %v660 = vmul.f32 %v653, 1.442695
        %v661 = vpow.pop %v660
        %v662 = vsel %vm617, %v655, 0.0
        %v663 = vsel %vm617, %v657, 0.0
        %v664 = vadd.f32 %v662, %v663
        %v665 = vrot.slane %v664, 4
        %v666 = vadd.f32 %v664, %v665
        %v667 = vrot.slane %v666, 2
        %v668 = vadd.f32 %v666, %v667
        %v669 = vrot.slane %v668, 1
        %v670 = vadd.f32 %v668, %v669
        %v671 = vsel %vm617, %v659, 0.0
        %v672 = vsel %vm617, %v661, 0.0
        %v673 = vadd.f32 %v671, %v672
        %v674 = vrot.slane %v673, 4
        %v675 = vadd.f32 %v673, %v674
        %v676 = vrot.slane %v675, 2
        %v677 = vadd.f32 %v675, %v676
        %v678 = vrot.slane %v677, 1
        %v679 = vadd.f32 %v677, %v678
        %v681 = vsel %vm617, %v386, 0
        %683 = vmatprep.subr.mxu0 0.0
        %684 = vmatpush1.msra.mxu0 0.0
        %685 = vmatprep.subr.mxu0 0.0
        %686 = vmatpush1.msra.mxu0 0.0
        %687 = vmatprep.subr.mxu0 0.0
        %688 = vmatpush1.msra.mxu0 0.0
        %689 = vmatprep.subr.mxu0 0.0
        %690 = vmatpush1.msra.mxu0 0.0
        %691 = vmatprep.subr.mxu0 0.0
        %692 = vmatpush1.msra.mxu0 0.0
        %693 = vmatprep.subr.mxu0 0.0
        %694 = vmatpush1.msra.mxu0 0.0
        %695 = vmatprep.subr.mxu0 0.0
        %696 = vmatpush1.msra.mxu0 0.0
        %697 = vmatprep.subr.mxu0 0.0
        %698 = vmatpush1.msra.mxu0 0.0
        %699 = vmatprep.subr.mxu0 0.0
        %700 = vmatpush1.msra.mxu0 0.0
        %701 = vmatprep.subr.mxu0 0.0
        %702 = vmatpush1.msra.mxu0 0.0
        %703 = vmatprep.subr.mxu0 0.0
        %704 = vmatpush1.msra.mxu0 0.0
        %705 = vmatprep.subr.mxu0 0.0
        %706 = vmatpush1.msra.mxu0 0.0
        %707 = vmatprep.subr.mxu0 0.0
        %708 = vmatpush1.msra.mxu0 0.0
        %709 = vmatprep.subr.mxu0 0.0
        %710 = vmatpush1.msra.mxu0 0.0
        %711 = vmatprep.subr.mxu0 0.0
        %712 = vmatpush1.msra.mxu0 %v657
        %713 = vmatprep.subr.mxu0 0.0
        %714 = vmatpush1.msra.mxu0 %v655
        %715 = vmatprep.subr.mxu0 0.0
        %716 = vmatpush2.msra.mxu0 0.0
        %717 = vmatprep.subr.mxu0 0.0
        %718 = vmatpush2.msra.mxu0 0.0
        %719 = vmatprep.subr.mxu0 0.0
        %720 = vmatpush2.msra.mxu0 0.0
        %721 = vmatprep.subr.mxu0 0.0
        %722 = vmatpush2.msra.mxu0 0.0
        %723 = vmatprep.subr.mxu0 0.0
        %724 = vmatpush2.msra.mxu0 0.0
        %725 = vmatprep.subr.mxu0 0.0
        %726 = vmatpush2.msra.mxu0 0.0
        %727 = vmatprep.subr.mxu0 0.0
        %728 = vmatpush2.msra.mxu0 0.0
        %729 = vmatprep.subr.mxu0 0.0
        %730 = vmatpush2.msra.mxu0 0.0
        %731 = vmatprep.subr.mxu0 0.0
        %732 = vmatpush2.msra.mxu0 0.0
        %733 = vmatprep.subr.mxu0 0.0
        %734 = vmatpush2.msra.mxu0 0.0
        %735 = vmatprep.subr.mxu0 0.0
        %736 = vmatpush2.msra.mxu0 0.0
        %737 = vmatprep.subr.mxu0 0.0
        %738 = vmatpush2.msra.mxu0 0.0
        %739 = vmatprep.subr.mxu0 0.0
        %740 = vmatpush2.msra.mxu0 0.0
        %741 = vmatprep.subr.mxu0 0.0
        %742 = vmatpush2.msra.mxu0 0.0
        %743 = vmatprep.subr.mxu0 0.0
        %744 = vmatpush2.msra.mxu0 0.0
        %745 = vmatprep.subr.mxu0 0.0
        %746 = vmatpush2.msra.mxu0 0.0
        %747 = vmatprep.mubr.f32.mxu0 0.0
        %748 = vmatmul.mubr.f32.gmra.mxu0 %v681
        %v749 = vpop.f32.mrf.mxu0
        %v750 = vadd.f32 0.0, %v749
        %v751 = vpop.f32.mrf.mxu0
        %752 = vdwg.mxu0
        %v754 = vsel %vm617, %v387, 0
        %756 = vmatprep.subr.mxu0 0.0
        %757 = vmatpush1.msra.mxu0 0.0
        %758 = vmatprep.subr.mxu0 0.0
        %759 = vmatpush1.msra.mxu0 0.0
        %760 = vmatprep.subr.mxu0 0.0
        %761 = vmatpush1.msra.mxu0 0.0
        %762 = vmatprep.subr.mxu0 0.0
        %763 = vmatpush1.msra.mxu0 0.0
        %764 = vmatprep.subr.mxu0 0.0
        %765 = vmatpush1.msra.mxu0 0.0
        %766 = vmatprep.subr.mxu0 0.0
        %767 = vmatpush1.msra.mxu0 0.0
        %768 = vmatprep.subr.mxu0 0.0
        %769 = vmatpush1.msra.mxu0 0.0
        %770 = vmatprep.subr.mxu0 0.0
        %771 = vmatpush1.msra.mxu0 0.0
        %772 = vmatprep.subr.mxu0 0.0
        %773 = vmatpush1.msra.mxu0 0.0
        %774 = vmatprep.subr.mxu0 0.0
        %775 = vmatpush1.msra.mxu0 0.0
        %776 = vmatprep.subr.mxu0 0.0
        %777 = vmatpush1.msra.mxu0 0.0
        %778 = vmatprep.subr.mxu0 0.0
        %779 = vmatpush1.msra.mxu0 0.0
        %780 = vmatprep.subr.mxu0 0.0
        %781 = vmatpush1.msra.mxu0 0.0
        %782 = vmatprep.subr.mxu0 0.0
        %783 = vmatpush1.msra.mxu0 0.0
        %784 = vmatprep.subr.mxu0 0.0
        %785 = vmatpush1.msra.mxu0 %v661
        %786 = vmatprep.subr.mxu0 0.0
        %787 = vmatpush1.msra.mxu0 %v659
        %788 = vmatprep.subr.mxu0 0.0
        %789 = vmatpush2.msra.mxu0 0.0
        %790 = vmatprep.subr.mxu0 0.0
        %791 = vmatpush2.msra.mxu0 0.0
        %792 = vmatprep.subr.mxu0 0.0
        %793 = vmatpush2.msra.mxu0 0.0
        %794 = vmatprep.subr.mxu0 0.0
        %795 = vmatpush2.msra.mxu0 0.0
        %796 = vmatprep.subr.mxu0 0.0
        %797 = vmatpush2.msra.mxu0 0.0
        %798 = vmatprep.subr.mxu0 0.0
        %799 = vmatpush2.msra.mxu0 0.0
        %800 = vmatprep.subr.mxu0 0.0
        %801 = vmatpush2.msra.mxu0 0.0
        %802 = vmatprep.subr.mxu0 0.0
        %803 = vmatpush2.msra.mxu0 0.0
        %804 = vmatprep.subr.mxu0 0.0
        %805 = vmatpush2.msra.mxu0 0.0
        %806 = vmatprep.subr.mxu0 0.0
        %807 = vmatpush2.msra.mxu0 0.0
        %808 = vmatprep.subr.mxu0 0.0
        %809 = vmatpush2.msra.mxu0 0.0
        %810 = vmatprep.subr.mxu0 0.0
        %811 = vmatpush2.msra.mxu0 0.0
        %812 = vmatprep.subr.mxu0 0.0
        %813 = vmatpush2.msra.mxu0 0.0
        %814 = vmatprep.subr.mxu0 0.0
        %815 = vmatpush2.msra.mxu0 0.0
        %816 = vmatprep.subr.mxu0 0.0
        %817 = vmatpush2.msra.mxu0 0.0
        %818 = vmatprep.subr.mxu0 0.0
        %819 = vmatpush2.msra.mxu0 0.0
        %820 = vmatprep.mubr.f32.mxu0 0.0
        %821 = vmatmul.mubr.f32.gmra.mxu0 %v754
        %v822 = vpop.f32.mrf.mxu0
        %v823 = vadd.f32 0.0, %v822
        %v824 = vpop.f32.mrf.mxu0
        %825 = vdwg.mxu0
        // Predicated region
        $region151: #{tpu_custom_call.1} parent=133 // pred_check
          %p826 = pneg %p368
        $region152: #{tpu_custom_call.1} parent=133 // pred_check_branch
          %828 = sbr.rel (%p826) target = $region154
        $region153: #{tpu_custom_call.1} parent=133 // pred_region
          %vm829 = vcmask 122880
          %830 = vst.msk [vmem:[#allocation4] sm:$0x1] %vm829, %v670
          %831 = vst.msk [vmem:[#allocation4 + $0x1] sm:$0x1] %vm829, %v679
          %832 = vst.msk [vmem:[#allocation5] sm:$0xff] %vm617, %v750
          %833 = vst.msk [vmem:[#allocation5 + $0x8] sm:$0xff] %vm617, %v823
        $region154: #{tpu_custom_call.1} parent=133 // pred_fallthru
          _
        %p834 = scmp.gt.s32.totalorder %s24, 0
        // Predicated region
        $region155: #{tpu_custom_call.1} parent=133 // pred_check
          %p835 = pneg %p834
        $region156: #{tpu_custom_call.1} parent=133 // pred_check_branch
          %837 = sbr.rel (%p835) target = $region158
        $region157: #{tpu_custom_call.1} parent=133 // pred_region
          %v838 = vsub.f32 %v615, %v636
          %v839 = vsub.f32 %v616, %v637
          %v840 = vmul.f32 %v838, 1.442695
          %v841 = vpow.pop %v840
          %v842 = vmul.f32 %v839, 1.442695
          %v843 = vpow.pop %v842
          %v844 = vld [vmem:[#allocation4] sm:$0x1]
          %v845 = vld [vmem:[#allocation4 + $0x1] sm:$0x1]
          %v846 = vmul.f32 %v841, %v844
          %v847 = vmul.f32 %v843, %v845
          %v848 = vadd.f32 %v846, %v670
          %v849 = vadd.f32 %v847, %v679
          %vm850 = vcmask 122880
          %851 = vst.msk [vmem:[#allocation4] sm:$0x1] %vm850, %v848
          %852 = vst.msk [vmem:[#allocation4 + $0x1] sm:$0x1] %vm850, %v849
          %v853 = vld [vmem:[#allocation5] sm:$0xff]
          %v854 = vld [vmem:[#allocation5 + $0x8] sm:$0xff]
          %v857 = vlaneseq
          %v858 = vshrl.u32 %v857, 7
          %v859 = vsub.s32 0, %v858
          %v860 = vrot.slane %v841, %v859
          %v861 = vlaneseq
          %v862 = vshrl.u32 %v861, 7
          %v863 = vsub.s32 0, %v862
          %v864 = vrot.slane %v843, %v863
          %v867 = vmul.f32 %v860, %v853
          %v868 = vmul.f32 %v864, %v854
          %v869 = vadd.f32 %v867, %v750
          %v870 = vadd.f32 %v868, %v823
          %871 = vst.msk [vmem:[#allocation5] sm:$0xff] %vm617, %v869
          %872 = vst.msk [vmem:[#allocation5 + $0x8] sm:$0xff] %vm617, %v870
        $region158: #{tpu_custom_call.1} parent=133 // pred_fallthru
          _
        %vm873 = vcmask 122880
        %874 = vst.msk [vmem:[#allocation3] sm:$0x1] %vm873, %v636
        %875 = vst.msk [vmem:[#allocation3 + $0x1] sm:$0x1] %vm873, %v637
        // Predicated region
        $region159: #{tpu_custom_call.1} parent=133 // pred_check
          %p876 = pneg %p368
        $region160: #{tpu_custom_call.1} parent=133 // pred_check_branch
          %878 = sbr.rel (%p876) target = $region162
        $region161: #{tpu_custom_call.1} parent=133 // pred_region
          %v879 = vld [vmem:[#allocation4] sm:$0x1]
          %v880 = vld [vmem:[#allocation4 + $0x1] sm:$0x1]
          %v881 = vrcp.pop %v879
          %v882 = vrcp.pop %v880
          %v883 = vld [vmem:[#allocation5] sm:$0xff]
          %v884 = vld [vmem:[#allocation5 + $0x8] sm:$0xff]
          %v887 = vlaneseq
          %v888 = vshrl.u32 %v887, 7
          %v889 = vsub.s32 0, %v888
          %v890 = vrot.slane %v881, %v889
          %v891 = vlaneseq
          %v892 = vshrl.u32 %v891, 7
          %v893 = vsub.s32 0, %v892
          %v894 = vrot.slane %v882, %v893
          %v897 = vmul.f32 %v883, %v890
          %v898 = vmul.f32 %v884, %v894
          %899 = vst.msk [vmem:[%s363] sm:$0xff] %vm617, %v897
          %900 = vst.msk [vmem:[%s363 + $0x8] sm:$0xff] %vm617, %v898
        $region162: #{tpu_custom_call.1} parent=133 // pred_fallthru
          _
        %s901 = sand.u32 %s130, 1
        %s902 = scalar_lea.sflag [#allocation10], %s901
        %s903 = sand.u32 %s130, 1
        %s904 = smul.addr %s903, 16
        %s905 = scalar_lea.vmem [#allocation9], %s904
        // Predicated region
        $region163: #{tpu_custom_call.1} parent=133 // pred_check
          %p906 = pneg %p140
        $region164: #{tpu_custom_call.1} parent=133 // pred_check_branch
          %908 = sbr.rel (%p906) target = $region166
        $region165: #{tpu_custom_call.1} parent=133 // pred_region
          %s909 = smul.u32 2, %s22
          %s911 = ssub.s32 256, 256
          %912 = vsyncadd %s902, %s911
          %s913 = sadd.s32 %s23, %s909
          %s914 = smul.addr %s913, 128
          %s915 = scalar_lea.hbm %s3, %s914
          %s916 = sshll.u32 %s905, 4
          %s917 = int_to_ptr.vmem [resolvable:$true] %s916
          %922 = dma.vmem_to_hbm [thread:$0]  %s917, 256, %s915, %s902, 128, 128, 8
        $region166: #{tpu_custom_call.1} parent=133 // pred_fallthru
          _
      $region134: #{tpu_custom_call.1} parent=5 // pred_fallthru
        _
      %p923 = scmp.le.s32.totalorder 2, %s12
      // Predicated region
      $region167: #{tpu_custom_call.1} parent=5 // pred_check
        %p924 = pneg %p923
      $region168: #{tpu_custom_call.1} parent=5 // pred_check_branch
        %926 = sbr.rel (%p924) target = $region170
      $region169: #{tpu_custom_call.1} parent=5 // pred_region
        %s927 = ssub.s32 %s12, 2
        // Predicated region
        $region171: #{tpu_custom_call.1} parent=169 // pred_check
          %p928 = pneg %p146
        $region172: #{tpu_custom_call.1} parent=169 // pred_check_branch
          %930 = sbr.rel (%p928) target = $region174
        $region173: #{tpu_custom_call.1} parent=169 // pred_region
          %s931 = sand.u32 %s131, 1
          %s932 = scalar_lea.sflag [#allocation10], %s931
          %s933 = sand.u32 %s131, 1
          %s934 = smul.addr %s933, 16
          %s935 = scalar_lea.vmem [#allocation9], %s934
          %936 = dma.done %s932, 256
        $region174: #{tpu_custom_call.1} parent=169 // pred_fallthru
          _
      $region170: #{tpu_custom_call.1} parent=5 // pred_fallthru
        _
    $region6: #{tpu_custom_call.1} parent=1 // loop_footer
      %s16 = sadd.s32 1, %s12
    $region7: #{tpu_custom_call.1} parent=1 // loop_footer_branch
      %11 = sbr.rel target = $region3
    $region8: #{tpu_custom_call.1} parent=1 // loop_exit
      _
    %937 = vsyncpa [#allocation10], 1
    %s938 = scalar_lea.sflag [#allocation10], 1
    %939 = vsyncpa %s938, 1

</llo_original>
